<compile_context>
chip_gen: v5e
topology: v5e:2x2
jax: 0.10.0
libtpu: 0.0.40
codegen_flags: <defaults>
</compile_context>

<pallas_src>
import functools

import jax
import jax.numpy as jnp
from jax import lax
from jax.experimental import pallas as pl
from jax.experimental.pallas import tpu as pltpu

# Explicit VMEM budget hint: > v5e's 16 MiB scoped default, < v7x's 64 MiB
# physical VMEM (with headroom), well under v6e's 128 MiB.
_VMEM_LIMIT_BYTES = 48 * 1024 * 1024


def _round_up(x, m):
    return ((x + m - 1) // m) * m


def _pick_tile(dim, desired, align):
    """Largest tile <= desired that divides `dim` and is a multiple of `align`.

    Falls back to the full dim (always a legal block size)."""
    if dim <= desired:
        return dim
    t = (desired // align) * align
    while t >= align:
        if dim % t == 0:
            return t
        t -= align
    return dim


# --------------------------------------------------------------------------- #
# QKV projection: x (M, C) @ w_qkv (3C, C)^T, written as three (M, C) planes.
# --------------------------------------------------------------------------- #
def _qkv_matmul_kernel(x_ref, w_ref, o_ref):
    # Contract on the weight's axis 1 (PyTorch (out, in) layout) -> x @ w.T.
    o_ref[0] = lax.dot_general(
        x_ref[...], w_ref[...],
        dimension_numbers=(((1,), (1,)), ((), ())),
        preferred_element_type=jnp.float32,
    ).astype(o_ref.dtype)


def pallas_qkv_proj(x, w_qkv, *, row_tile=256):
    """x: (M, C), w_qkv: (3C, C) [PyTorch (out,in)] -> (3, M, C) q/k/v planes."""
    M, C = x.shape
    assert w_qkv.shape == (3 * C, C)
    tm = _pick_tile(M, row_tile, 8)
    grid = (M // tm, 3)
    return pl.pallas_call(
        _qkv_matmul_kernel,
        out_shape=jax.ShapeDtypeStruct((3, M, C), x.dtype),
        grid=grid,
        in_specs=[
            # x block index is constant along the inner plane axis -> reused.
            pl.BlockSpec((tm, C), lambda i, p: (i, 0)),
            pl.BlockSpec((C, C), lambda i, p: (p, 0)),     # q/k/v weight plane
        ],
        out_specs=pl.BlockSpec((1, tm, C), lambda i, p: (p, i, 0)),
        compiler_params=pltpu.CompilerParams(
            dimension_semantics=("parallel", "arbitrary"),
            vmem_limit_bytes=_VMEM_LIMIT_BYTES),
    )(x, w_qkv)


# --------------------------------------------------------------------------- #
# Output projection: y = x @ w^T + b, tiled over rows and output columns.
# --------------------------------------------------------------------------- #
def _linear_bias_kernel(x_ref, w_ref, b_ref, o_ref):
    acc = lax.dot_general(
        x_ref[...], w_ref[...],
        dimension_numbers=(((1,), (1,)), ((), ())),
        preferred_element_type=jnp.float32)
    o_ref[...] = (acc + b_ref[...].astype(jnp.float32)).astype(o_ref.dtype)


def pallas_linear(x, w, b, *, row_tile=256, col_tile=256):
    """x: (M, K), w: (Nout, K) [PyTorch (out,in)], b: (Nout,) -> (M, Nout)."""
    M, K = x.shape
    Nout, Kw = w.shape
    assert K == Kw and b.shape == (Nout,)
    tm = _pick_tile(M, row_tile, 8)
    tn = _pick_tile(Nout, col_tile, 128)
    grid = (M // tm, Nout // tn)
    return pl.pallas_call(
        _linear_bias_kernel,
        out_shape=jax.ShapeDtypeStruct((M, Nout), x.dtype),
        grid=grid,
        in_specs=[
            pl.BlockSpec((tm, K), lambda i, j: (i, 0)),
            pl.BlockSpec((tn, K), lambda i, j: (j, 0)),
            pl.BlockSpec((1, tn), lambda i, j: (0, j)),
        ],
        out_specs=pl.BlockSpec((tm, tn), lambda i, j: (i, j)),
        compiler_params=pltpu.CompilerParams(
            dimension_semantics=("parallel", "parallel"),
            vmem_limit_bytes=_VMEM_LIMIT_BYTES),
    )(x, w, b.reshape(1, Nout))


# --------------------------------------------------------------------------- #
# Flash attention, all heads per block.
#   grid = (B, q_tiles, kv_tiles)
#   q_ref: (1, 1, tq, C)   k_ref/v_ref: (1, 1, tkv, C)   o_ref: (1, tq, C)
#   scratch (per head): scaled q (tq, hd), m (tq, 1), l (tq, 1), acc (tq, hd).
# --------------------------------------------------------------------------- #
def _attn_kernel(q_ref, k_ref, v_ref, o_ref, q_sc, m_sc, l_sc, acc_sc, *,
                 scale, num_heads, head_dim, kv_tile, seq_len, padded_len):
    kv = pl.program_id(2)
    hd = head_dim

    @pl.when(kv == 0)
    def _init():
        m_sc[...] = jnp.full(m_sc.shape, -jnp.inf, dtype=m_sc.dtype)
        l_sc[...] = jnp.zeros(l_sc.shape, dtype=l_sc.dtype)
        acc_sc[...] = jnp.zeros(acc_sc.shape, dtype=acc_sc.dtype)
        # Hoisted out of the KV loop: scale Q once per (batch, q-tile) in f32
        # and pre-split it per head.
        q = q_ref[0, 0].astype(jnp.float32) * scale            # (tq, C)
        for h in range(num_heads):
            q_sc[h] = q[:, h * hd:(h + 1) * hd]

    k_all = k_ref[0, 0]                                        # (tkv, C)
    v_all = v_ref[0, 0]                                        # (tkv, C)

    mask_keys = padded_len != seq_len                          # static
    if mask_keys:
        key_pos = kv * kv_tile + lax.broadcasted_iota(jnp.int32, (1, kv_tile), 1)
        key_valid = key_pos < seq_len                          # (1, tkv)

    for h in range(num_heads):
        kh = k_all[:, h * hd:(h + 1) * hd]                     # (tkv, hd)
        vh = v_all[:, h * hd:(h + 1) * hd]                     # (tkv, hd)
        # s[i, j] = sum_d q[i, d] * k[j, d]  (contract head dim, no transpose).
        s = lax.dot_general(
            q_sc[h], kh,
            dimension_numbers=(((1,), (1,)), ((), ())),
            preferred_element_type=jnp.float32)                # (tq, tkv)
        if mask_keys:
            s = jnp.where(key_valid, s, -jnp.inf)
        m_prev = m_sc[h]                                       # (tq, 1)
        m_new = jnp.maximum(m_prev, s.max(axis=-1, keepdims=True))
        alpha = jnp.exp(m_prev - m_new)
        p = jnp.exp(s - m_new)                                 # (tq, tkv)
        l_sc[h] = alpha * l_sc[h] + p.sum(axis=-1, keepdims=True)
        acc_sc[h] = alpha * acc_sc[h] + lax.dot_general(
            p.astype(v_all.dtype), vh,
            dimension_numbers=(((1,), (0,)), ((), ())),
            preferred_element_type=jnp.float32)                # (tq, hd)
        m_sc[h] = m_new

    @pl.when(kv == pl.num_programs(2) - 1)
    def _finalize():
        for h in range(num_heads):
            inv_l = pl.reciprocal(l_sc[h], approx=True)        # EUP reciprocal
            o_ref[0, :, pl.ds(h * hd, hd)] = (acc_sc[h] * inv_l).astype(o_ref.dtype)


def pallas_attention(qkv, *, batch, padded_len, seq_len, num_heads, head_dim,
                     q_tile, kv_tile, scale, out_dtype):
    """qkv: (3, batch*padded_len, C) -> (batch, padded_len, C) token-major."""
    C = num_heads * head_dim
    qkv_r = qkv.reshape(3, batch, padded_len, C)               # free reshape
    n_q = padded_len // q_tile
    n_kv = padded_len // kv_tile
    kernel = functools.partial(
        _attn_kernel, scale=scale, num_heads=num_heads, head_dim=head_dim,
        kv_tile=kv_tile, seq_len=seq_len, padded_len=padded_len)
    return pl.pallas_call(
        kernel,
        out_shape=jax.ShapeDtypeStruct((batch, padded_len, C), out_dtype),
        grid=(batch, n_q, n_kv),
        in_specs=[
            pl.BlockSpec((1, 1, q_tile, C), lambda b, qi, kv: (0, b, qi, 0)),
            pl.BlockSpec((1, 1, kv_tile, C), lambda b, qi, kv: (1, b, kv, 0)),
            pl.BlockSpec((1, 1, kv_tile, C), lambda b, qi, kv: (2, b, kv, 0)),
        ],
        out_specs=pl.BlockSpec((1, q_tile, C), lambda b, qi, kv: (b, qi, 0)),
        scratch_shapes=[
            pltpu.VMEM((num_heads, q_tile, head_dim), jnp.float32),  # scaled q
            pltpu.VMEM((num_heads, q_tile, 1), jnp.float32),         # running max
            pltpu.VMEM((num_heads, q_tile, 1), jnp.float32),         # running denom
            pltpu.VMEM((num_heads, q_tile, head_dim), jnp.float32),  # running numer
        ],
        compiler_params=pltpu.CompilerParams(
            dimension_semantics=("parallel", "parallel", "arbitrary"),
            vmem_limit_bytes=_VMEM_LIMIT_BYTES),
    )(qkv_r, qkv_r, qkv_r)


# --------------------------------------------------------------------------- #
# MHSA forward wrapper (NCHW in / NCHW out, matching the PyTorch module).
# --------------------------------------------------------------------------- #
def mhsa_forward(x, w_qkv, w_proj, b_proj, *, head_dim=32, seq_tile=256,
                 row_tile=256, col_tile=256):
    """x: (B, C, H, W).  w_qkv: (3C, C), w_proj: (C, C) [PyTorch (out,in)]."""
    B, C, H, W = x.shape
    assert C % head_dim == 0, "dim should be divisible by head_dim"
    nh = C // head_dim
    N = H * W
    scale = head_dim ** (-0.5)

    # One tile size for both Q and KV; pad N to a multiple of it so padding
    # is < tile (every KV tile keeps at least one real key -> no NaNs from
    # fully-masked tiles).  Padded keys are masked with -inf in the kernel.
    T = min(seq_tile, _round_up(N, 8))
    Np = _round_up(N, T)

    # (B, C, H, W) -> (B, N, C): tokens on sublanes, channels on the lane axis.
    xf = jnp.transpose(x.reshape(B, C, N), (0, 2, 1))
    if Np != N:
        xf = jnp.pad(xf, ((0, 0), (0, Np - N), (0, 0)))
    xf = xf.reshape(B * Np, C)

    # QKV projection (qkv_bias=False -> no bias); q/k/v planes come out split,
    # so the (3, B, nh, N, hd) permute is never materialized.
    qkv = pallas_qkv_proj(xf, w_qkv, row_tile=row_tile)        # (3, B*Np, C)

    # Flash attention; lane-dense (tq, C) token-major output, no head transpose.
    o = pallas_attention(qkv, batch=B, padded_len=Np, seq_len=N,
                         num_heads=nh, head_dim=head_dim,
                         q_tile=T, kv_tile=T, scale=scale,
                         out_dtype=x.dtype)                    # (B, Np, C)

    # Output projection with bias (attn_drop / proj_drop are identity at 0.0).
    o = pallas_linear(o.reshape(B * Np, C), w_proj, b_proj,
                      row_tile=row_tile, col_tile=col_tile)    # (B*Np, C)

    # Drop padded tokens and restore NCHW.
    o = o.reshape(B, Np, C)[:, :N]
    return jnp.transpose(o, (0, 2, 1)).reshape(B, C, H, W)


# --------------------------------------------------------------------------- #
# Plain-JAX reference (mirrors the PyTorch forward).
# --------------------------------------------------------------------------- #
def mhsa_reference(x, w_qkv, w_proj, b_proj, *, head_dim=32):
    B, C, H, W = x.shape
    nh = C // head_dim
    N = H * W
    scale = head_dim ** (-0.5)
    xf = jnp.transpose(x.reshape(B, C, N), (0, 2, 1))                 # (B, N, C)
    qkv = xf @ jnp.transpose(w_qkv)                                   # (B, N, 3C)
    qkv = qkv.reshape(B, N, 3, nh, head_dim).transpose(2, 0, 3, 1, 4)
    q, k, v = qkv[0], qkv[1], qkv[2]                                  # (B, nh, N, hd)
    attn = jnp.einsum("bhqd,bhkd->bhqk", q * scale, k)
    attn = jax.nn.softmax(attn, axis=-1)
    out = jnp.einsum("bhqk,bhkd->bhqd", attn, v)
    out = out.transpose(0, 2, 1, 3).reshape(B, N, C)
    out = out @ jnp.transpose(w_proj) + b_proj
    return jnp.transpose(out, (0, 2, 1)).reshape(B, C, H, W)


# --------------------------------------------------------------------------- #
# Demo / self-check
# --------------------------------------------------------------------------- #
if __name__ == "__main__":
    # Small synthetic config (dim must divide by head_dim).  N = 196 does not
    # divide the sequence tile, so the padded/masked path is exercised.
    dim, head_dim = 64, 32          # num_heads = 2
    B, H, W = 2, 14, 14             # N = 196 tokens -> padded to 256

    key = jax.random.PRNGKey(0)
    kx, kq, kp, kb = jax.random.split(key, 4)

    x = jax.random.normal(kx, (B, dim, H, W), jnp.float32)            # NCHW
    wstd = dim ** (-0.5)
    w_qkv = wstd * jax.random.normal(kq, (3 * dim, dim), jnp.float32)  # (out, in)
    w_proj = wstd * jax.random.normal(kp, (dim, dim), jnp.float32)
    b_proj = 0.1 * jax.random.normal(kb, (dim,), jnp.float32)

    # seq_tile=128 so the demo exercises multi-tile online softmax + key
    # masking at this small N (production default is 256).
    out = mhsa_forward(x, w_qkv, w_proj, b_proj, head_dim=head_dim, seq_tile=128)
    out = jax.block_until_ready(out)

    ref = mhsa_reference(x, w_qkv, w_proj, b_proj, head_dim=head_dim)

    assert out.shape == (B, dim, H, W), out.shape
    max_err = float(jnp.max(jnp.abs(out - ref)))
    assert jnp.allclose(out, ref, rtol=2e-2, atol=2e-2), max_err
    print("KERNEL_OK")
</pallas_src>

<mosaic_0001>
module attributes {stable_mosaic.version = 11 : i64} {
  func.func @_qkv_matmul_kernel(%arg0: i32, %arg1: i32, %arg2: memref<256x64xf32, #tpu.memory_space<vmem>>, %arg3: memref<64x64xf32, #tpu.memory_space<vmem>>, %arg4: memref<1x256x64xf32, #tpu.memory_space<vmem>>) attributes {dimension_semantics = [#tpu.dimension_semantics<parallel>, #tpu.dimension_semantics<arbitrary>], iteration_bounds = array<i64: 2, 3>, scalar_prefetch = 0 : i64, scratch_operands = 0 : i64, tpu.core_type = #tpu.core_type<tc>, window_params = [{transform_indices = @transform_0, window_bounds = array<i64: 256, 64>}, {transform_indices = @transform_1, window_bounds = array<i64: 64, 64>}, {transform_indices = @transform_2, window_bounds = array<i64: 1, 256, 64>}]} {
    %c0 = arith.constant 0 : index
    %c0_0 = arith.constant 0 : index
    %0 = vector.load %arg2[%c0, %c0_0] : memref<256x64xf32, #tpu.memory_space<vmem>>, vector<256x64xf32>
    %c0_1 = arith.constant 0 : index
    %c0_2 = arith.constant 0 : index
    %1 = vector.load %arg3[%c0_1, %c0_2] : memref<64x64xf32, #tpu.memory_space<vmem>>, vector<64x64xf32>
    %cst = arith.constant dense<0.000000e+00> : vector<256x64xf32>
    %2 = tpu.matmul %0, %1, %cst {dimension_numbers = #tpu.dot_dimension_numbers<[1], [1], [0], [0], [0, 0, 1, 0], [], []>} : vector<256x64xf32>, vector<64x64xf32>, vector<256x64xf32> -> vector<256x64xf32>
    %c0_3 = arith.constant 0 : index
    %c0_4 = arith.constant 0 : index
    %c0_5 = arith.constant 0 : index
    %3 = vector.load %arg4[%c0_3, %c0_4, %c0_5] : memref<1x256x64xf32, #tpu.memory_space<vmem>>, vector<1x256x64xf32>
    %4 = vector.shape_cast %3 : vector<1x256x64xf32> to vector<256x64xf32>
    %5 = vector.shape_cast %2 : vector<256x64xf32> to vector<1x256x64xf32>
    tpu.vector_store %arg4[%c0_3, %c0_4, %c0_5], %5 {strides = array<i32>} : memref<1x256x64xf32, #tpu.memory_space<vmem>>, vector<1x256x64xf32>,
    return
  }
  func.func @transform_0(%arg0: i32, %arg1: i32) -> (i32, i32) {
    %c0_i32 = arith.constant 0 : i32
    %c0_i32_0 = arith.constant 0 : i32
    return %arg0, %c0_i32 : i32, i32
  }
  func.func @transform_1(%arg0: i32, %arg1: i32) -> (i32, i32) {
    %c0_i32 = arith.constant 0 : i32
    %c0_i32_0 = arith.constant 0 : i32
    return %arg1, %c0_i32 : i32, i32
  }
  func.func @transform_2(%arg0: i32, %arg1: i32) -> (i32, i32, i32) {
    %c0_i32 = arith.constant 0 : i32
    %c0_i32_0 = arith.constant 0 : i32
    return %arg1, %arg0, %c0_i32 : i32, i32, i32
  }
}

</mosaic_0001>

<llo_original>
// kernel: tpu_custom_call.1
$region0: #{tpu_custom_call.1}
  #allocation0 [shape = 'u32[]', space=smem, size = 0x4, offset = 0x4, fixed_abs, tag = 'smem constant byte address 0x4 - core index']
  #allocation1 [shape = 'u32[72,128]{1,0:T(1,128)}', space=vmem, size = 0x9000, scoped, tag = 'internal scratch']
  %s0 = inlined_call_operand.vmem [shape: f32[512,64], index: 0, kind: input, shape index: {}]
  %s1 = inlined_call_operand.vmem [shape: f32[192,64], index: 1, kind: input, shape index: {}]
  %s2 = inlined_call_operand.vmem [shape: f32[3,512,64], index: 2, kind: output, shape index: {}]
  %s3 = sld [smem:[#allocation0]]
  $region41: #{tpu_custom_call.1} parent=0
    _
  %s5 = ssub.s32 1, %s3
  %s6 = scalar_select 0, %s5, %s3
  loop: start=0, step=1, limit=8
  $region2: #{tpu_custom_call.1} parent=0 // loop_pre_header
    _
  $region3: #{tpu_custom_call.1} parent=0 // loop_header
    %s8 = sphi 0, %s12
    %p9 = scmp.ge.s32.totalorder %s8, 8
    %s15 = sphi 0, %s27
    %s16 = sphi 0, %s23
    %s17 = sphi 0, %s15
    %s18 = sphi 0, %s16
    %s19 = sphi 0, %s17
    %s20 = sphi 0, %s18
    %s30 = sphi 0, %s32
    %s33 = sphi 0, %s30
    %s34 = sphi 0, %s33
    %s50 = sphi 0, %s34
    %s56 = sphi 0, %s58
    %s59 = sphi 0, %s56
    %s60 = sphi 0, %s59
    %s76 = sphi 0, %s60
    %s84 = sphi 0, %s86
    %s87 = sphi 0, %s84
    %s88 = sphi 0, %s87
    %s104 = sphi 0, %s88
  $region4: #{tpu_custom_call.1} parent=0 // loop_header_branch
    %11 = sbr.rel (%p9) target = $region8
  $region5: #{tpu_custom_call.1} parent=0 // loop_body
    %s13 = ssub.s32 %s8, 1
    %s14 = ssub.s32 %s8, 2
    %s21 = sadd.s32 1, %s16
    %p22 = scmp.ge.s32.totalorder %s21, 3
    %s23 = scalar_select %p22, 0, %s21
    %s24 = sadd.s32 1, %s15
    %s25 = scalar_select %p22, %s24, %s15
    %p26 = scmp.ge.s32.totalorder %s25, 2
    %s27 = scalar_select %p26, 0, %s25
    %s28 = ssub.s32 %s15, %s27
    %p29 = scmp.eq.s32.totalorder %s28, 0
    %s31 = sadd.s32 %s30, 1
    %s32 = scalar_select %p29, %s30, %s31
    %p35 = pneg %p29
    %p36 = scmp.eq.s32.totalorder %s8, 5
    %p37 = por %p35, %p36
    %p38 = scmp.ne.s32.totalorder %s30, %s33
    %p39 = scmp.eq.s32.totalorder %s8, 0
    %p40 = por %p38, %p39
    %p41 = scmp.ne.s32.totalorder %s30, %s33
    %p42 = scmp.eq.s32.totalorder %s13, 5
    %p43 = por %p41, %p42
    %p44 = scmp.ne.s32.totalorder %s33, %s34
    %p45 = scmp.eq.s32.totalorder %s13, 0
    %p46 = por %p44, %p45
    %p47 = scmp.ne.s32.totalorder %s33, %s34
    %p48 = scmp.eq.s32.totalorder %s14, 5
    %p49 = por %p47, %p48
    %p51 = scmp.ne.s32.totalorder %s34, %s50
    %p52 = scmp.eq.s32.totalorder %s14, 0
    %p53 = por %p51, %p52
    %s54 = ssub.s32 %s16, %s23
    %p55 = scmp.eq.s32.totalorder %s54, 0
    %s57 = sadd.s32 %s56, 1
    %s58 = scalar_select %p55, %s56, %s57
    %p61 = pneg %p55
    %p62 = scmp.eq.s32.totalorder %s8, 5
    %p63 = por %p61, %p62
    %p64 = scmp.ne.s32.totalorder %s56, %s59
    %p65 = scmp.eq.s32.totalorder %s8, 0
    %p66 = por %p64, %p65
    %p67 = scmp.ne.s32.totalorder %s56, %s59
    %p68 = scmp.eq.s32.totalorder %s13, 5
    %p69 = por %p67, %p68
    %p70 = scmp.ne.s32.totalorder %s59, %s60
    %p71 = scmp.eq.s32.totalorder %s13, 0
    %p72 = por %p70, %p71
    %p73 = scmp.ne.s32.totalorder %s59, %s60
    %p74 = scmp.eq.s32.totalorder %s14, 5
    %p75 = por %p73, %p74
    %p77 = scmp.ne.s32.totalorder %s60, %s76
    %p78 = scmp.eq.s32.totalorder %s14, 0
    %p79 = por %p77, %p78
    %s80 = ssub.s32 %s16, %s23
    %s81 = ssub.s32 %s15, %s27
    %s82 = sor.u32 %s80, %s81
    %p83 = scmp.eq.s32.totalorder %s82, 0
    %s85 = sadd.s32 %s84, 1
    %s86 = scalar_select %p83, %s84, %s85
    %p89 = pneg %p83
    %p90 = scmp.eq.s32.totalorder %s8, 5
    %p91 = por %p89, %p90
    %p92 = scmp.ne.s32.totalorder %s84, %s87
    %p93 = scmp.eq.s32.totalorder %s8, 0
    %p94 = por %p92, %p93
    %p95 = scmp.ne.s32.totalorder %s84, %s87
    %p96 = scmp.eq.s32.totalorder %s13, 5
    %p97 = por %p95, %p96
    %p98 = scmp.ne.s32.totalorder %s87, %s88
    %p99 = scmp.eq.s32.totalorder %s13, 0
    %p100 = por %p98, %p99
    %p101 = scmp.ne.s32.totalorder %s87, %s88
    %p102 = scmp.eq.s32.totalorder %s14, 5
    %p103 = por %p101, %p102
    %p105 = scmp.ne.s32.totalorder %s88, %s104
    %p106 = scmp.eq.s32.totalorder %s14, 0
    %p107 = por %p105, %p106
    %p108 = scmp.le.s32.totalorder 1, %s8
    %p109 = scmp.lt.s32.totalorder %s8, 7
    %p110 = pnand %p108, %p109
    %p111 = pneg %p110
    // Predicated region
    $region9: #{tpu_custom_call.1} parent=5 // pred_check
      _
    $region10: #{tpu_custom_call.1} parent=5 // pred_check_branch
      %113 = sbr.rel (%p110) target = $region12
    $region11: #{tpu_custom_call.1} parent=5 // pred_region
      %s114 = ssub.s32 %s8, 1
    $region12: #{tpu_custom_call.1} parent=5 // pred_fallthru
      _
    %p115 = scmp.lt.s32.totalorder %s8, 6
    // Predicated region
    $region13: #{tpu_custom_call.1} parent=5 // pred_check
      %p116 = pneg %p115
    $region14: #{tpu_custom_call.1} parent=5 // pred_check_branch
      %118 = sbr.rel (%p116) target = $region16
    $region15: #{tpu_custom_call.1} parent=5 // pred_region
      // Predicated region
      $region17: #{tpu_custom_call.1} parent=15 // pred_check
        %p119 = pneg %p40
      $region18: #{tpu_custom_call.1} parent=15 // pred_check_branch
        %121 = sbr.rel (%p119) target = $region20
      $region19: #{tpu_custom_call.1} parent=15 // pred_region
        %s122 = smul.u32 32, %s15
        %p123 = scmp.lt.s32.totalorder %s122, 63
        %s124 = scalar_select %p123, %s122, 63
        %s125 = smul.addr %s124, 8
        %s126 = scalar_lea.vmem %s0, %s125
        %s127 = smul.u32 32, %s15
      $region20: #{tpu_custom_call.1} parent=15 // pred_fallthru
        _
      // Predicated region
      $region21: #{tpu_custom_call.1} parent=15 // pred_check
        %p128 = pneg %p66
      $region22: #{tpu_custom_call.1} parent=15 // pred_check_branch
        %130 = sbr.rel (%p128) target = $region24
      $region23: #{tpu_custom_call.1} parent=15 // pred_region
        %s131 = smul.u32 8, %s16
        %p132 = scmp.lt.s32.totalorder %s131, 23
        %s133 = scalar_select %p132, %s131, 23
        %s134 = smul.addr %s133, 8
        %s135 = scalar_lea.vmem %s1, %s134
        %s136 = smul.u32 8, %s16
      $region24: #{tpu_custom_call.1} parent=15 // pred_fallthru
        _
    $region16: #{tpu_custom_call.1} parent=5 // pred_fallthru
      _
    %p137 = scmp.le.s32.totalorder 1, %s8
    %p138 = scmp.lt.s32.totalorder %s8, 7
    %p139 = pnand %p137, %p138
    %p140 = pneg %p139
    // Predicated region
    $region25: #{tpu_custom_call.1} parent=5 // pred_check
      _
    $region26: #{tpu_custom_call.1} parent=5 // pred_check_branch
      %142 = sbr.rel (%p139) target = $region28
    $region27: #{tpu_custom_call.1} parent=5 // pred_region
      %s143 = ssub.s32 %s8, 1
      %s144 = smul.u32 32, %s17
      %p145 = scmp.lt.s32.totalorder %s144, 63
      %s146 = scalar_select %p145, %s144, 63
      %s147 = smul.addr %s146, 8
      %s148 = scalar_lea.vmem %s0, %s147
      %p149 = pneg %p46
      %p150 = pneg %p43
      %s151 = smul.u32 8, %s18
      %p152 = scmp.lt.s32.totalorder %s151, 23
      %s153 = scalar_select %p152, %s151, 23
      %s154 = smul.addr %s153, 8
      %s155 = scalar_lea.vmem %s1, %s154
      %p156 = pneg %p72
      %p157 = pneg %p69
      %p158 = pneg %p100
      %p159 = pneg %p97
      %s160 = smul.u32 32, %s17
      %p161 = scmp.lt.s32.totalorder %s18, 2
      %s162 = scalar_select %p161, %s18, 2
      %p163 = scmp.lt.s32.totalorder %s160, 63
      %s164 = scalar_select %p163, %s160, 63
      %s165 = smul.addr %s162, 64
      %s166 = sadd.s32 %s164, %s165
      %s167 = smul.addr %s166, 8
      %s168 = scalar_lea.vmem %s2, %s167
      %s169 = smul.u32 32, %s17
      %p170 = scmp.lt.s32.totalorder %s169, 63
      %s171 = scalar_select %p170, %s169, 63
      %s172 = smul.addr %s171, 8
      %s173 = scalar_lea.vmem %s0, %s172
      %s174 = smul.u32 32, %s17
      %s175 = smul.u32 8, %s18
      %p176 = scmp.lt.s32.totalorder %s175, 23
      %s177 = scalar_select %p176, %s175, 23
      %s178 = smul.addr %s177, 8
      %s179 = scalar_lea.vmem %s1, %s178
      %s180 = smul.u32 8, %s18
      %s181 = smul.u32 32, %s17
      %p182 = scmp.lt.s32.totalorder %s18, 2
      %s183 = scalar_select %p182, %s18, 2
      %p184 = scmp.lt.s32.totalorder %s181, 63
      %s185 = scalar_select %p184, %s181, 63
      %s186 = smul.addr %s183, 64
      %s187 = sadd.s32 %s185, %s186
      %s188 = smul.addr %s187, 8
      %s189 = scalar_lea.vmem %s2, %s188
      %s190 = smul.u32 32, %s17
      %v191 = vld [vmem:[%s173] sm:$0xff]
      %v192 = vld [vmem:[%s173 + $0x8] sm:$0xff]
      %v193 = vld [vmem:[%s173 + $0x10] sm:$0xff]
      %v194 = vld [vmem:[%s173 + $0x18] sm:$0xff]
      %v195 = vld [vmem:[%s173 + $0x20] sm:$0xff]
      %v196 = vld [vmem:[%s173 + $0x28] sm:$0xff]
      %v197 = vld [vmem:[%s173 + $0x30] sm:$0xff]
      %v198 = vld [vmem:[%s173 + $0x38] sm:$0xff]
      %v199 = vld [vmem:[%s173 + $0x40] sm:$0xff]
      %v200 = vld [vmem:[%s173 + $0x48] sm:$0xff]
      %v201 = vld [vmem:[%s173 + $0x50] sm:$0xff]
      %v202 = vld [vmem:[%s173 + $0x58] sm:$0xff]
      %v203 = vld [vmem:[%s173 + $0x60] sm:$0xff]
      %v204 = vld [vmem:[%s173 + $0x68] sm:$0xff]
      %v205 = vld [vmem:[%s173 + $0x70] sm:$0xff]
      %v206 = vld [vmem:[%s173 + $0x78] sm:$0xff]
      %v207 = vld [vmem:[%s173 + $0x80] sm:$0xff]
      %v208 = vld [vmem:[%s173 + $0x88] sm:$0xff]
      %v209 = vld [vmem:[%s173 + $0x90] sm:$0xff]
      %v210 = vld [vmem:[%s173 + $0x98] sm:$0xff]
      %v211 = vld [vmem:[%s173 + $0xa0] sm:$0xff]
      %v212 = vld [vmem:[%s173 + $0xa8] sm:$0xff]
      %v213 = vld [vmem:[%s173 + $0xb0] sm:$0xff]
      %v214 = vld [vmem:[%s173 + $0xb8] sm:$0xff]
      %v215 = vld [vmem:[%s173 + $0xc0] sm:$0xff]
      %v216 = vld [vmem:[%s173 + $0xc8] sm:$0xff]
      %v217 = vld [vmem:[%s173 + $0xd0] sm:$0xff]
      %v218 = vld [vmem:[%s173 + $0xd8] sm:$0xff]
      %v219 = vld [vmem:[%s173 + $0xe0] sm:$0xff]
      %v220 = vld [vmem:[%s173 + $0xe8] sm:$0xff]
      %v221 = vld [vmem:[%s173 + $0xf0] sm:$0xff]
      %v222 = vld [vmem:[%s173 + $0xf8] sm:$0xff]
      %v223 = vld [vmem:[%s179] sm:$0xff]
      %v224 = vld [vmem:[%s179 + $0x8] sm:$0xff]
      %v225 = vld [vmem:[%s179 + $0x10] sm:$0xff]
      %v226 = vld [vmem:[%s179 + $0x18] sm:$0xff]
      %v227 = vld [vmem:[%s179 + $0x20] sm:$0xff]
      %v228 = vld [vmem:[%s179 + $0x28] sm:$0xff]
      %v229 = vld [vmem:[%s179 + $0x30] sm:$0xff]
      %v230 = vld [vmem:[%s179 + $0x38] sm:$0xff]
      %vm231 = vcmask 523264
      %v233 = vsel %vm231, %v191, 0
      %v236 = vsel %vm231, %v192, 0
      %v239 = vsel %vm231, %v193, 0
      %v242 = vsel %vm231, %v194, 0
      %v245 = vsel %vm231, %v195, 0
      %v248 = vsel %vm231, %v196, 0
      %v251 = vsel %vm231, %v197, 0
      %v254 = vsel %vm231, %v198, 0
      %v257 = vsel %vm231, %v199, 0
      %v260 = vsel %vm231, %v200, 0
      %v263 = vsel %vm231, %v201, 0
      %v266 = vsel %vm231, %v202, 0
      %v269 = vsel %vm231, %v203, 0
      %v272 = vsel %vm231, %v204, 0
      %v275 = vsel %vm231, %v205, 0
      %v278 = vsel %vm231, %v206, 0
      %v281 = vsel %vm231, %v207, 0
      %v284 = vsel %vm231, %v208, 0
      %v287 = vsel %vm231, %v209, 0
      %v290 = vsel %vm231, %v210, 0
      %v293 = vsel %vm231, %v211, 0
      %v296 = vsel %vm231, %v212, 0
      %v299 = vsel %vm231, %v213, 0
      %v302 = vsel %vm231, %v214, 0
      %v305 = vsel %vm231, %v215, 0
      %v308 = vsel %vm231, %v216, 0
      %v311 = vsel %vm231, %v217, 0
      %v314 = vsel %vm231, %v218, 0
      %v317 = vsel %vm231, %v219, 0
      %v320 = vsel %vm231, %v220, 0
      %v323 = vsel %vm231, %v221, 0
      %v326 = vsel %vm231, %v222, 0
      %v329 = vsel %vm231, %v223, 0
      %v332 = vsel %vm231, %v224, 0
      %v335 = vsel %vm231, %v225, 0
      %v338 = vsel %vm231, %v226, 0
      %v341 = vsel %vm231, %v227, 0
      %v344 = vsel %vm231, %v228, 0
      %v347 = vsel %vm231, %v229, 0
      %v350 = vsel %vm231, %v230, 0
      %352 = vmatpush.xpose.msra.mxu0 0.0
      %353 = vmatpush.xpose.msra.mxu0 0.0
      %354 = vmatpush.xpose.msra.mxu0 0.0
      %355 = vmatpush.xpose.msra.mxu0 0.0
      %356 = vmatpush.xpose.msra.mxu0 0.0
      %357 = vmatpush.xpose.msra.mxu0 0.0
      %358 = vmatpush.xpose.msra.mxu0 0.0
      %359 = vmatpush.xpose.msra.mxu0 0.0
      %360 = vmatpush.xpose.msra.mxu0 %v350
      %361 = vmatpush.xpose.msra.mxu0 %v347
      %362 = vmatpush.xpose.msra.mxu0 %v344
      %363 = vmatpush.xpose.msra.mxu0 %v341
      %364 = vmatpush.xpose.msra.mxu0 %v338
      %365 = vmatpush.xpose.msra.mxu0 %v335
      %366 = vmatpush.xpose.msra.mxu0 %v332
      %367 = vmatpush.xpose.msra.mxu0 %v329
      %368 = vmatmul.f32.gmra.mxu0 %v233
      %v369 = vpop.f32.mrf.mxu0
      %v370 = vadd.f32 0.0, %v369
      %371 = vmatmul.f32.gmra.mxu0 %v236
      %v372 = vpop.f32.mrf.mxu0
      %v373 = vadd.f32 0.0, %v372
      %374 = vmatmul.f32.gmra.mxu0 %v239
      %v375 = vpop.f32.mrf.mxu0
      %v376 = vadd.f32 0.0, %v375
      %377 = vmatmul.f32.gmra.mxu0 %v242
      %v378 = vpop.f32.mrf.mxu0
      %v379 = vadd.f32 0.0, %v378
      %380 = vmatmul.f32.gmra.mxu0 %v245
      %v381 = vpop.f32.mrf.mxu0
      %v382 = vadd.f32 0.0, %v381
      %383 = vmatmul.f32.gmra.mxu0 %v248
      %v384 = vpop.f32.mrf.mxu0
      %v385 = vadd.f32 0.0, %v384
      %386 = vmatmul.f32.gmra.mxu0 %v251
      %v387 = vpop.f32.mrf.mxu0
      %v388 = vadd.f32 0.0, %v387
      %389 = vmatmul.f32.gmra.mxu0 %v254
      %v390 = vpop.f32.mrf.mxu0
      %v391 = vadd.f32 0.0, %v390
      %392 = vmatmul.f32.gmra.mxu0 %v257
      %v393 = vpop.f32.mrf.mxu0
      %v394 = vadd.f32 0.0, %v393
      %395 = vmatmul.f32.gmra.mxu0 %v260
      %v396 = vpop.f32.mrf.mxu0
      %v397 = vadd.f32 0.0, %v396
      %398 = vmatmul.f32.gmra.mxu0 %v263
      %v399 = vpop.f32.mrf.mxu0
      %v400 = vadd.f32 0.0, %v399
      %401 = vmatmul.f32.gmra.mxu0 %v266
      %v402 = vpop.f32.mrf.mxu0
      %v403 = vadd.f32 0.0, %v402
      %404 = vmatmul.f32.gmra.mxu0 %v269
      %v405 = vpop.f32.mrf.mxu0
      %v406 = vadd.f32 0.0, %v405
      %407 = vmatmul.f32.gmra.mxu0 %v272
      %v408 = vpop.f32.mrf.mxu0
      %v409 = vadd.f32 0.0, %v408
      %410 = vmatmul.f32.gmra.mxu0 %v275
      %v411 = vpop.f32.mrf.mxu0
      %v412 = vadd.f32 0.0, %v411
      %413 = vmatmul.f32.gmra.mxu0 %v278
      %v414 = vpop.f32.mrf.mxu0
      %v415 = vadd.f32 0.0, %v414
      %416 = vmatmul.f32.gmra.mxu0 %v281
      %v417 = vpop.f32.mrf.mxu0
      %v418 = vadd.f32 0.0, %v417
      %419 = vmatmul.f32.gmra.mxu0 %v284
      %v420 = vpop.f32.mrf.mxu0
      %v421 = vadd.f32 0.0, %v420
      %422 = vmatmul.f32.gmra.mxu0 %v287
      %v423 = vpop.f32.mrf.mxu0
      %v424 = vadd.f32 0.0, %v423
      %425 = vmatmul.f32.gmra.mxu0 %v290
      %v426 = vpop.f32.mrf.mxu0
      %v427 = vadd.f32 0.0, %v426
      %428 = vmatmul.f32.gmra.mxu0 %v293
      %v429 = vpop.f32.mrf.mxu0
      %v430 = vadd.f32 0.0, %v429
      %431 = vmatmul.f32.gmra.mxu0 %v296
      %v432 = vpop.f32.mrf.mxu0
      %v433 = vadd.f32 0.0, %v432
      %434 = vmatmul.f32.gmra.mxu0 %v299
      %v435 = vpop.f32.mrf.mxu0
      %v436 = vadd.f32 0.0, %v435
      %437 = vmatmul.f32.gmra.mxu0 %v302
      %v438 = vpop.f32.mrf.mxu0
      %v439 = vadd.f32 0.0, %v438
      %440 = vmatmul.f32.gmra.mxu0 %v305
      %v441 = vpop.f32.mrf.mxu0
      %v442 = vadd.f32 0.0, %v441
      %443 = vmatmul.f32.gmra.mxu0 %v308
      %v444 = vpop.f32.mrf.mxu0
      %v445 = vadd.f32 0.0, %v444
      %446 = vmatmul.f32.gmra.mxu0 %v311
      %v447 = vpop.f32.mrf.mxu0
      %v448 = vadd.f32 0.0, %v447
      %449 = vmatmul.f32.gmra.mxu0 %v314
      %v450 = vpop.f32.mrf.mxu0
      %v451 = vadd.f32 0.0, %v450
      %452 = vmatmul.f32.gmra.mxu0 %v317
      %v453 = vpop.f32.mrf.mxu0
      %v454 = vadd.f32 0.0, %v453
      %455 = vmatmul.f32.gmra.mxu0 %v320
      %v456 = vpop.f32.mrf.mxu0
      %v457 = vadd.f32 0.0, %v456
      %458 = vmatmul.f32.gmra.mxu0 %v323
      %v459 = vpop.f32.mrf.mxu0
      %v460 = vadd.f32 0.0, %v459
      %461 = vmatmul.f32.gmra.mxu0 %v326
      %v462 = vpop.f32.mrf.mxu0
      %v463 = vadd.f32 0.0, %v462
      %464 = vdwg.mxu0
      %465 = vst.msk [vmem:[%s189] sm:$0xff] %vm231, %v370
      %466 = vst.msk [vmem:[%s189 + $0x8] sm:$0xff] %vm231, %v373
      %467 = vst.msk [vmem:[%s189 + $0x10] sm:$0xff] %vm231, %v376
      %468 = vst.msk [vmem:[%s189 + $0x18] sm:$0xff] %vm231, %v379
      %469 = vst.msk [vmem:[%s189 + $0x20] sm:$0xff] %vm231, %v382
      %470 = vst.msk [vmem:[%s189 + $0x28] sm:$0xff] %vm231, %v385
      %471 = vst.msk [vmem:[%s189 + $0x30] sm:$0xff] %vm231, %v388
      %472 = vst.msk [vmem:[%s189 + $0x38] sm:$0xff] %vm231, %v391
      %473 = vst.msk [vmem:[%s189 + $0x40] sm:$0xff] %vm231, %v394
      %474 = vst.msk [vmem:[%s189 + $0x48] sm:$0xff] %vm231, %v397
      %475 = vst.msk [vmem:[%s189 + $0x50] sm:$0xff] %vm231, %v400
      %476 = vst.msk [vmem:[%s189 + $0x58] sm:$0xff] %vm231, %v403
      %477 = vst.msk [vmem:[%s189 + $0x60] sm:$0xff] %vm231, %v406
      %478 = vst.msk [vmem:[%s189 + $0x68] sm:$0xff] %vm231, %v409
      %479 = vst.msk [vmem:[%s189 + $0x70] sm:$0xff] %vm231, %v412
      %480 = vst.msk [vmem:[%s189 + $0x78] sm:$0xff] %vm231, %v415
      %481 = vst.msk [vmem:[%s189 + $0x80] sm:$0xff] %vm231, %v418
      %482 = vst.msk [vmem:[%s189 + $0x88] sm:$0xff] %vm231, %v421
      %483 = vst.msk [vmem:[%s189 + $0x90] sm:$0xff] %vm231, %v424
      %484 = vst.msk [vmem:[%s189 + $0x98] sm:$0xff] %vm231, %v427
      %485 = vst.msk [vmem:[%s189 + $0xa0] sm:$0xff] %vm231, %v430
      %486 = vst.msk [vmem:[%s189 + $0xa8] sm:$0xff] %vm231, %v433
      %487 = vst.msk [vmem:[%s189 + $0xb0] sm:$0xff] %vm231, %v436
      %488 = vst.msk [vmem:[%s189 + $0xb8] sm:$0xff] %vm231, %v439
      %489 = vst.msk [vmem:[%s189 + $0xc0] sm:$0xff] %vm231, %v442
      %490 = vst.msk [vmem:[%s189 + $0xc8] sm:$0xff] %vm231, %v445
      %491 = vst.msk [vmem:[%s189 + $0xd0] sm:$0xff] %vm231, %v448
      %492 = vst.msk [vmem:[%s189 + $0xd8] sm:$0xff] %vm231, %v451
      %493 = vst.msk [vmem:[%s189 + $0xe0] sm:$0xff] %vm231, %v454
      %494 = vst.msk [vmem:[%s189 + $0xe8] sm:$0xff] %vm231, %v457
      %495 = vst.msk [vmem:[%s189 + $0xf0] sm:$0xff] %vm231, %v460
      %496 = vst.msk [vmem:[%s189 + $0xf8] sm:$0xff] %vm231, %v463
      %s497 = smul.u32 32, %s17
      %p498 = scmp.lt.s32.totalorder %s18, 2
      %s499 = scalar_select %p498, %s18, 2
      %p500 = scmp.lt.s32.totalorder %s497, 63
      %s501 = scalar_select %p500, %s497, 63
      %s502 = smul.addr %s499, 64
      %s503 = sadd.s32 %s501, %s502
      %s504 = smul.addr %s503, 8
      %s505 = scalar_lea.vmem %s2, %s504
      // Predicated region
      $region29: #{tpu_custom_call.1} parent=27 // pred_check
        %p506 = pneg %p97
      $region30: #{tpu_custom_call.1} parent=27 // pred_check_branch
        %508 = sbr.rel (%p506) target = $region32
      $region31: #{tpu_custom_call.1} parent=27 // pred_region
        %s509 = smul.u32 32, %s17
      $region32: #{tpu_custom_call.1} parent=27 // pred_fallthru
        _
    $region28: #{tpu_custom_call.1} parent=5 // pred_fallthru
      _
    %p510 = scmp.le.s32.totalorder 2, %s8
    // Predicated region
    $region33: #{tpu_custom_call.1} parent=5 // pred_check
      %p511 = pneg %p510
    $region34: #{tpu_custom_call.1} parent=5 // pred_check_branch
      %513 = sbr.rel (%p511) target = $region36
    $region35: #{tpu_custom_call.1} parent=5 // pred_region
      %s514 = ssub.s32 %s8, 2
      // Predicated region
      $region37: #{tpu_custom_call.1} parent=35 // pred_check
        %p515 = pneg %p103
      $region38: #{tpu_custom_call.1} parent=35 // pred_check_branch
        %517 = sbr.rel (%p515) target = $region40
      $region39: #{tpu_custom_call.1} parent=35 // pred_region
        %s518 = smul.u32 32, %s19
        %p519 = scmp.lt.s32.totalorder %s20, 2
        %s520 = scalar_select %p519, %s20, 2
        %p521 = scmp.lt.s32.totalorder %s518, 63
        %s522 = scalar_select %p521, %s518, 63
        %s523 = smul.addr %s520, 64
        %s524 = sadd.s32 %s522, %s523
        %s525 = smul.addr %s524, 8
        %s526 = scalar_lea.vmem %s2, %s525
      $region40: #{tpu_custom_call.1} parent=35 // pred_fallthru
        _
    $region36: #{tpu_custom_call.1} parent=5 // pred_fallthru
      _
  $region6: #{tpu_custom_call.1} parent=0 // loop_footer
    %s12 = sadd.s32 1, %s8
  $region7: #{tpu_custom_call.1} parent=0 // loop_footer_branch
    %7 = sbr.rel target = $region3
  $region8: #{tpu_custom_call.1} parent=0 // loop_exit
    _

</llo_original>
